<compile_context>
chip_gen: v6e
topology: v6e:2x2x1
jax: 0.10.0
libtpu: 0.0.40
codegen_flags: <defaults>
</compile_context>

<pallas_src>
import jax
import jax.numpy as jnp
from jax.experimental import pallas as pl
from jax.experimental.pallas import tpu as pltpu

BN_EPS = 1e-5
VMEM_LIMIT_BYTES = 48 * 1024 * 1024  # safe headroom on v7x (64 MiB physical)


def _round_up(a, b):
    return -(-a // b) * b


# ---------------------------------------------------------------------------
# Kernel 1: per-node pipeline (GIN aggregation + MLP), tiled over node tiles.
#   agg = adj @ x   (reduction over k tiles, f32 accumulator scratch)
#   pre = (1+eps)*x + agg
#   h   = relu(pre @ W1' + b1')      (BN1 pre-folded into W1'/b1')
#   hid = h @ W2 + b2
# ---------------------------------------------------------------------------
def node_kernel(eps_ref, adj_ref, xk_ref, xi_ref, w1_ref, b1_ref, w2_ref, b2_ref,
                hid_ref, acc_ref):
    k = pl.program_id(1)

    @pl.when(k == 0)
    def _():
        acc_ref[...] = jnp.zeros_like(acc_ref)

    # bf16 0/1 adjacency x bf16 features, f32 accumulation on the MXU.
    acc_ref[...] += jnp.dot(adj_ref[...], xk_ref[...],
                            preferred_element_type=jnp.float32)

    @pl.when(k == pl.num_programs(1) - 1)
    def _():
        eps = eps_ref[0]
        pre = (1.0 + eps) * xi_ref[...].astype(jnp.float32) + acc_ref[...]
        h = jnp.dot(pre.astype(jnp.bfloat16), w1_ref[...],
                    preferred_element_type=jnp.float32) + b1_ref[...]
        h = jnp.maximum(h, 0.0)
        hid_ref[...] = jnp.dot(h.astype(jnp.bfloat16), w2_ref[...],
                               preferred_element_type=jnp.float32) + b2_ref[...]


# ---------------------------------------------------------------------------
# Kernel 2: global_add_pool + fc (Linear with BN2 folded), reduction over node
# tiles with a (G, H) VMEM accumulator.
# ---------------------------------------------------------------------------
def pool_fc_kernel(pool_ref, hid_ref, wf_ref, bf_ref, score_ref, pooled_ref):
    k = pl.program_id(0)

    @pl.when(k == 0)
    def _():
        pooled_ref[...] = jnp.zeros_like(pooled_ref)

    pooled_ref[...] += jnp.dot(pool_ref[...], hid_ref[...].astype(jnp.bfloat16),
                               preferred_element_type=jnp.float32)

    @pl.when(k == pl.num_programs(0) - 1)
    def _():
        score_ref[...] = jnp.dot(pooled_ref[...].astype(jnp.bfloat16), wf_ref[...],
                                 preferred_element_type=jnp.float32) + bf_ref[...]


def block_forward(x, edge_index, batch_idx, num_graphs, params, *, tile=512):
    """Pallas forward for Block (gin / bn / num_conv_layer=2 / sum pool)."""
    N, F = x.shape
    H = params["w1"].shape[1]
    C = params["wf"].shape[1]

    # --- Fold eval-mode BatchNorms into the adjacent Linears (exact algebra) ---
    s1 = params["g1"] / jnp.sqrt(params["var1"] + BN_EPS)
    w1_fold = params["w1"] * s1
    b1_fold = (params["b1"] - params["mu1"]) * s1 + params["be1"]
    s2 = params["g2"] / jnp.sqrt(params["var2"] + BN_EPS)
    wf_fold = params["wf"] * s2
    bf_fold = (params["bf"] - params["mu2"]) * s2 + params["be2"]

    # --- Padded, lane-dense shapes & generation-safe tiles ---
    Fp = _round_up(F, 128)
    Hp = _round_up(H, 128)
    Cp = _round_up(C, 128)
    Gp = _round_up(num_graphs, 8)
    if N <= tile:
        Np = _round_up(N, 128)
        TM = TK = Np
    else:
        Np = _round_up(N, tile)
        TM = TK = tile
    num_i, num_k = Np // TM, Np // TK

    # --- Dense adjacency (target <- source); multi-edges accumulate.  0/1
    #     counts are exact in bf16 as long as per-entry multiplicity <= 256. ---
    src, tgt = edge_index[0], edge_index[1]
    adj = jnp.zeros((Np, Np), jnp.float32).at[tgt, src].add(1.0).astype(jnp.bfloat16)

    # One-hot pooling matrix: pool[g, i] = 1 if node i belongs to graph g
    # (padded nodes / padded graphs are all-zero, so they never contribute).
    pool = (batch_idx[None, :] == jnp.arange(Gp)[:, None]).astype(jnp.bfloat16)
    pool = jnp.pad(pool, ((0, 0), (0, Np - N)))

    # Padded operands; matmul operands in bf16, biases stay f32.
    xp = jnp.pad(x, ((0, Np - N), (0, Fp - F))).astype(jnp.bfloat16)
    w1p = jnp.pad(w1_fold, ((0, Fp - F), (0, Hp - H))).astype(jnp.bfloat16)
    b1p = jnp.pad(b1_fold, ((0, 0), (0, Hp - H)))
    w2p = jnp.pad(params["w2"], ((0, Hp - H), (0, Hp - H))).astype(jnp.bfloat16)
    b2p = jnp.pad(params["b2"], ((0, 0), (0, Hp - H)))
    wfp = jnp.pad(wf_fold, ((0, Hp - H), (0, Cp - C))).astype(jnp.bfloat16)
    bfp = jnp.pad(bf_fold, ((0, 0), (0, Cp - C)))
    eps = params["eps"].reshape((1,)).astype(jnp.float32)

    smem = pl.BlockSpec(memory_space=pltpu.MemorySpace.SMEM)

    # ---------------- Kernel 1: node pipeline ----------------
    hid_pad = pl.pallas_call(
        node_kernel,
        out_shape=jax.ShapeDtypeStruct((Np, Hp), jnp.float32),
        grid_spec=pltpu.PrefetchScalarGridSpec(
            num_scalar_prefetch=0,
            grid=(num_i, num_k),
            in_specs=[
                smem,                                             # eps (scalar)
                pl.BlockSpec((TM, TK), lambda i, k: (i, k)),      # adj tile
                pl.BlockSpec((TK, Fp), lambda i, k: (k, 0)),      # x (reduction view)
                pl.BlockSpec((TM, Fp), lambda i, k: (i, 0)),      # x (self view)
                pl.BlockSpec((Fp, Hp), lambda i, k: (0, 0)),      # W1 (BN folded), resident
                pl.BlockSpec((1, Hp), lambda i, k: (0, 0)),       # b1, resident
                pl.BlockSpec((Hp, Hp), lambda i, k: (0, 0)),      # W2, resident
                pl.BlockSpec((1, Hp), lambda i, k: (0, 0)),       # b2, resident
            ],
            out_specs=pl.BlockSpec((TM, Hp), lambda i, k: (i, 0)),
            scratch_shapes=[pltpu.VMEM((TM, Fp), jnp.float32)],
        ),
        compiler_params=pltpu.CompilerParams(
            dimension_semantics=("parallel", "arbitrary"),
            vmem_limit_bytes=VMEM_LIMIT_BYTES,
        ),
    )(eps, adj, xp, xp, w1p, b1p, w2p, b2p)

    # ---------------- Kernel 2: sum-pool + fc ----------------
    score_pad = pl.pallas_call(
        pool_fc_kernel,
        out_shape=jax.ShapeDtypeStruct((Gp, Cp), jnp.float32),
        grid_spec=pltpu.PrefetchScalarGridSpec(
            num_scalar_prefetch=0,
            grid=(num_k,),
            in_specs=[
                pl.BlockSpec((Gp, TK), lambda k: (0, k)),         # pool tile
                pl.BlockSpec((TK, Hp), lambda k: (k, 0)),         # hid tile
                pl.BlockSpec((Hp, Cp), lambda k: (0, 0)),         # Wf (BN folded), resident
                pl.BlockSpec((1, Cp), lambda k: (0, 0)),          # bf, resident
            ],
            out_specs=pl.BlockSpec((Gp, Cp), lambda k: (0, 0)),
            scratch_shapes=[pltpu.VMEM((Gp, Hp), jnp.float32)],
        ),
        compiler_params=pltpu.CompilerParams(
            dimension_semantics=("arbitrary",),
            vmem_limit_bytes=VMEM_LIMIT_BYTES,
        ),
    )(pool, hid_pad, wfp, bfp)

    return hid_pad[:N, :H], score_pad[:num_graphs, :C]


# ---------------------------------------------------------------------------
# References
# ---------------------------------------------------------------------------
def ref_forward(x, edge_index, batch_idx, num_graphs, params):
    """Pure-JAX f32 reference of the module semantics."""
    N = x.shape[0]
    src, tgt = edge_index[0], edge_index[1]
    adj = jnp.zeros((N, N), jnp.float32).at[tgt, src].add(1.0)
    pool = (batch_idx[None, :] == jnp.arange(num_graphs)[:, None]).astype(jnp.float32)

    agg = adj @ x
    pre = (1.0 + params["eps"][0]) * x + agg
    h = pre @ params["w1"] + params["b1"]
    h = (h - params["mu1"]) / jnp.sqrt(params["var1"] + BN_EPS) * params["g1"] + params["be1"]
    h = jnp.maximum(h, 0.0)
    hid = h @ params["w2"] + params["b2"]
    pooled = pool @ hid
    s = pooled @ params["wf"] + params["bf"]
    s = (s - params["mu2"]) / jnp.sqrt(params["var2"] + BN_EPS) * params["g2"] + params["be2"]
    return hid, s


def ref_forward_kernel_precision(x, edge_index, batch_idx, num_graphs, params):
    """Reference that mirrors the kernel's bf16 casts / BN folds exactly."""
    bf16 = jnp.bfloat16
    N = x.shape[0]
    src, tgt = edge_index[0], edge_index[1]
    adj = jnp.zeros((N, N), jnp.float32).at[tgt, src].add(1.0).astype(bf16)
    pool = (batch_idx[None, :] == jnp.arange(num_graphs)[:, None]).astype(bf16)

    s1 = params["g1"] / jnp.sqrt(params["var1"] + BN_EPS)
    w1 = (params["w1"] * s1).astype(bf16)
    b1 = (params["b1"] - params["mu1"]) * s1 + params["be1"]
    s2 = params["g2"] / jnp.sqrt(params["var2"] + BN_EPS)
    wf = (params["wf"] * s2).astype(bf16)
    bf = (params["bf"] - params["mu2"]) * s2 + params["be2"]
    w2 = params["w2"].astype(bf16)

    xb = x.astype(bf16)
    agg = jnp.dot(adj, xb, preferred_element_type=jnp.float32)
    pre = (1.0 + params["eps"][0]) * xb.astype(jnp.float32) + agg
    h = jnp.dot(pre.astype(bf16), w1, preferred_element_type=jnp.float32) + b1
    h = jnp.maximum(h, 0.0)
    hid = jnp.dot(h.astype(bf16), w2, preferred_element_type=jnp.float32) + params["b2"]
    pooled = jnp.dot(pool, hid.astype(bf16), preferred_element_type=jnp.float32)
    s = jnp.dot(pooled.astype(bf16), wf, preferred_element_type=jnp.float32) + bf
    return hid, s


def init_params(key, F, H, C):
    ks = jax.random.split(key, 12)
    p = {
        "eps": jnp.zeros((1,), jnp.float32),  # nn.Parameter(torch.Tensor([0]))
        # Linear(F, H): stored pre-transposed (in, out) for x @ W
        "w1": 0.1 * jax.random.normal(ks[0], (F, H), jnp.float32),
        "b1": 0.1 * jax.random.normal(ks[1], (1, H), jnp.float32),
        # BatchNorm1d(H) (eval mode: running stats)
        "g1": 1.0 + 0.1 * jax.random.normal(ks[2], (1, H), jnp.float32),
        "be1": 0.1 * jax.random.normal(ks[3], (1, H), jnp.float32),
        "mu1": 0.1 * jax.random.normal(ks[4], (1, H), jnp.float32),
        "var1": 1.0 + 0.1 * jax.random.uniform(ks[5], (1, H), jnp.float32),
        # Linear(H, H)
        "w2": 0.1 * jax.random.normal(ks[6], (H, H), jnp.float32),
        "b2": 0.1 * jax.random.normal(ks[7], (1, H), jnp.float32),
        # fc: Linear(H, C) + BatchNorm1d(C)
        "wf": 0.1 * jax.random.normal(ks[8], (H, C), jnp.float32),
        "bf": 0.1 * jax.random.normal(ks[9], (1, C), jnp.float32),
        "g2": 1.0 + 0.1 * jax.random.normal(ks[10], (1, C), jnp.float32),
        "be2": 0.1 * jax.random.normal(ks[11], (1, C), jnp.float32),
        "mu2": jnp.zeros((1, C), jnp.float32),
        "var2": jnp.ones((1, C), jnp.float32),
    }
    return p


if __name__ == "__main__":
    key = jax.random.PRNGKey(0)
    k_x, k_p = jax.random.split(key)

    # Small batch of 2 graphs, 8 nodes each.
    N, F, H, C = 16, 8, 32, 4
    num_graphs = 2
    x = jax.random.normal(k_x, (N, F), jnp.float32)
    batch_idx = jnp.array([0] * 8 + [1] * 8, jnp.int32)

    # Bidirectional ring edges within each graph (source row, target row).
    src, tgt = [], []
    for g in range(num_graphs):
        base = g * 8
        for i in range(8):
            a, b = base + i, base + (i + 1) % 8
            src += [a, b]
            tgt += [b, a]
    edge_index = jnp.array([src, tgt], jnp.int32)  # (2, 32)

    params = init_params(k_p, F, H, C)

    hid, score = block_forward(x, edge_index, batch_idx, num_graphs, params)
    jax.block_until_ready((hid, score))

    assert hid.shape == (N, H) and score.shape == (num_graphs, C)

    # Tight check against a reference with identical bf16 casts / BN folds.
    hid_kp, score_kp = ref_forward_kernel_precision(x, edge_index, batch_idx, num_graphs, params)
    assert jnp.allclose(hid, hid_kp, atol=2e-3, rtol=2e-3)
    assert jnp.allclose(score, score_kp, atol=2e-3, rtol=2e-3)

    # Loose check against the pure-f32 module reference (bf16-level agreement).
    hid_f32, score_f32 = ref_forward(x, edge_index, batch_idx, num_graphs, params)
    assert jnp.allclose(hid, hid_f32, atol=1e-1, rtol=1e-1)
    assert jnp.allclose(score, score_f32, atol=1e-1, rtol=1e-1)

    print("KERNEL_OK")
</pallas_src>

<mosaic_0001>
module attributes {stable_mosaic.version = 11 : i64} {
  func.func @node_kernel(%arg0: i32, %arg1: i32, %arg2: memref<1xf32, #tpu.memory_space<smem>>, %arg3: memref<128x128xbf16, #tpu.memory_space<vmem>>, %arg4: memref<128x128xbf16, #tpu.memory_space<vmem>>, %arg5: memref<128x128xbf16, #tpu.memory_space<vmem>>, %arg6: memref<128x128xbf16, #tpu.memory_space<vmem>>, %arg7: memref<1x128xf32, #tpu.memory_space<vmem>>, %arg8: memref<128x128xbf16, #tpu.memory_space<vmem>>, %arg9: memref<1x128xf32, #tpu.memory_space<vmem>>, %arg10: memref<128x128xf32, #tpu.memory_space<vmem>>, %arg11: memref<128x128xf32, #tpu.memory_space<vmem>>) attributes {dimension_semantics = [#tpu.dimension_semantics<parallel>, #tpu.dimension_semantics<arbitrary>], iteration_bounds = array<i64: 1, 1>, scalar_prefetch = 0 : i64, scratch_operands = 1 : i64, tpu.core_type = #tpu.core_type<tc>, window_params = [{transform_indices = @transform_0, window_bounds = array<i64: 1>}, {transform_indices = @transform_1, window_bounds = array<i64: 128, 128>}, {transform_indices = @transform_2, window_bounds = array<i64: 128, 128>}, {transform_indices = @transform_3, window_bounds = array<i64: 128, 128>}, {pipeline_mode = #tpu.pipeline_mode<synchronous>, transform_indices = @transform_4, window_bounds = array<i64: 128, 128>}, {pipeline_mode = #tpu.pipeline_mode<synchronous>, transform_indices = @transform_5, window_bounds = array<i64: 1, 128>}, {pipeline_mode = #tpu.pipeline_mode<synchronous>, transform_indices = @transform_6, window_bounds = array<i64: 128, 128>}, {pipeline_mode = #tpu.pipeline_mode<synchronous>, transform_indices = @transform_7, window_bounds = array<i64: 1, 128>}, {transform_indices = @transform_8, window_bounds = array<i64: 128, 128>}]} {
    %c0_i32 = arith.constant 0 : i32
    %0 = arith.cmpi eq, %arg1, %c0_i32 : i32
    %1 = arith.extui %0 : i1 to i32
    %c0_i32_0 = arith.constant 0 : i32
    %2 = arith.cmpi ne, %1, %c0_i32_0 : i32
    scf.if %2 {
      %cst_10 = arith.constant 0.000000e+00 : f32
      %12 = vector.broadcast %cst_10 : f32 to vector<128x128xf32>
      %c0_11 = arith.constant 0 : index
      %c0_12 = arith.constant 0 : index
      %13 = vector.load %arg11[%c0_11, %c0_12] : memref<128x128xf32, #tpu.memory_space<vmem>>, vector<128x128xf32>
      tpu.vector_store %arg11[%c0_11, %c0_12], %12 {strides = array<i32>} : memref<128x128xf32, #tpu.memory_space<vmem>>, vector<128x128xf32>,
    } else {
    }
    %c0 = arith.constant 0 : index
    %c0_1 = arith.constant 0 : index
    %3 = vector.load %arg11[%c0, %c0_1] : memref<128x128xf32, #tpu.memory_space<vmem>>, vector<128x128xf32>
    %c0_2 = arith.constant 0 : index
    %c0_3 = arith.constant 0 : index
    %4 = vector.load %arg3[%c0_2, %c0_3] : memref<128x128xbf16, #tpu.memory_space<vmem>>, vector<128x128xbf16>
    %c0_4 = arith.constant 0 : index
    %c0_5 = arith.constant 0 : index
    %5 = vector.load %arg4[%c0_4, %c0_5] : memref<128x128xbf16, #tpu.memory_space<vmem>>, vector<128x128xbf16>
    %cst = arith.constant dense<0.000000e+00> : vector<128x128xf32>
    %6 = tpu.matmul %4, %5, %cst {dimension_numbers = #tpu.dot_dimension_numbers<[1], [0], [0], [1], [0, 0, 1, 1], [], []>} : vector<128x128xbf16>, vector<128x128xbf16>, vector<128x128xf32> -> vector<128x128xf32>
    %7 = arith.addf %3, %6 : vector<128x128xf32>
    %c0_6 = arith.constant 0 : index
    %c0_7 = arith.constant 0 : index
    %8 = vector.load %arg11[%c0_6, %c0_7] : memref<128x128xf32, #tpu.memory_space<vmem>>, vector<128x128xf32>
    tpu.vector_store %arg11[%c0_6, %c0_7], %7 {strides = array<i32>} : memref<128x128xf32, #tpu.memory_space<vmem>>, vector<128x128xf32>,
    %c0_i32_8 = arith.constant 0 : i32
    %9 = arith.cmpi eq, %arg1, %c0_i32_8 : i32
    %10 = arith.extui %9 : i1 to i32
    %c0_i32_9 = arith.constant 0 : i32
    %11 = arith.cmpi ne, %10, %c0_i32_9 : i32
    scf.if %11 {
      %c0_10 = arith.constant 0 : index
      %12 = memref.load %arg2[%c0_10] : memref<1xf32, #tpu.memory_space<smem>>
      %cst_11 = arith.constant 1.000000e+00 : f32
      %13 = arith.addf %cst_11, %12 : f32
      %c0_12 = arith.constant 0 : index
      %c0_13 = arith.constant 0 : index
      %14 = vector.load %arg5[%c0_12, %c0_13] : memref<128x128xbf16, #tpu.memory_space<vmem>>, vector<128x128xbf16>
      %15 = arith.extf %14 : vector<128x128xbf16> to vector<128x128xf32>
      %16 = vector.broadcast %13 : f32 to vector<128x128xf32>
      %17 = arith.mulf %16, %15 : vector<128x128xf32>
      %c0_14 = arith.constant 0 : index
      %c0_15 = arith.constant 0 : index
      %18 = vector.load %arg11[%c0_14, %c0_15] : memref<128x128xf32, #tpu.memory_space<vmem>>, vector<128x128xf32>
      %19 = arith.addf %17, %18 : vector<128x128xf32>
      %20 = arith.truncf %19 : vector<128x128xf32> to vector<128x128xbf16>
      %c0_16 = arith.constant 0 : index
      %c0_17 = arith.constant 0 : index
      %21 = vector.load %arg6[%c0_16, %c0_17] : memref<128x128xbf16, #tpu.memory_space<vmem>>, vector<128x128xbf16>
      %cst_18 = arith.constant dense<0.000000e+00> : vector<128x128xf32>
      %22 = tpu.matmul %20, %21, %cst_18 {dimension_numbers = #tpu.dot_dimension_numbers<[1], [0], [0], [1], [0, 0, 1, 1], [], []>} : vector<128x128xbf16>, vector<128x128xbf16>, vector<128x128xf32> -> vector<128x128xf32>
      %c0_19 = arith.constant 0 : index
      %c0_20 = arith.constant 0 : index
      %23 = vector.load %arg7[%c0_19, %c0_20] : memref<1x128xf32, #tpu.memory_space<vmem>>, vector<1x128xf32>
      %24 = vector.broadcast %23 : vector<1x128xf32> to vector<128x128xf32>
      %25 = arith.addf %22, %24 : vector<128x128xf32>
      %cst_21 = arith.constant 0.000000e+00 : f32
      %26 = vector.broadcast %cst_21 : f32 to vector<128x128xf32>
      %27 = arith.maximumf %25, %26 : vector<128x128xf32>
      %28 = arith.truncf %27 : vector<128x128xf32> to vector<128x128xbf16>
      %c0_22 = arith.constant 0 : index
      %c0_23 = arith.constant 0 : index
      %29 = vector.load %arg8[%c0_22, %c0_23] : memref<128x128xbf16, #tpu.memory_space<vmem>>, vector<128x128xbf16>
      %cst_24 = arith.constant dense<0.000000e+00> : vector<128x128xf32>
      %30 = tpu.matmul %28, %29, %cst_24 {dimension_numbers = #tpu.dot_dimension_numbers<[1], [0], [0], [1], [0, 0, 1, 1], [], []>} : vector<128x128xbf16>, vector<128x128xbf16>, vector<128x128xf32> -> vector<128x128xf32>
      %c0_25 = arith.constant 0 : index
      %c0_26 = arith.constant 0 : index
      %31 = vector.load %arg9[%c0_25, %c0_26] : memref<1x128xf32, #tpu.memory_space<vmem>>, vector<1x128xf32>
      %32 = vector.broadcast %31 : vector<1x128xf32> to vector<128x128xf32>
      %33 = arith.addf %30, %32 : vector<128x128xf32>
      %c0_27 = arith.constant 0 : index
      %c0_28 = arith.constant 0 : index
      %34 = vector.load %arg10[%c0_27, %c0_28] : memref<128x128xf32, #tpu.memory_space<vmem>>, vector<128x128xf32>
      tpu.vector_store %arg10[%c0_27, %c0_28], %33 {strides = array<i32>} : memref<128x128xf32, #tpu.memory_space<vmem>>, vector<128x128xf32>,
    } else {
    }
    return
  }
  func.func @transform_0(%arg0: i32, %arg1: i32) -> i32 {
    %c0_i32 = arith.constant 0 : i32
    %c0_i32_0 = arith.constant 0 : i32
    return %c0_i32 : i32
  }
  func.func @transform_1(%arg0: i32, %arg1: i32) -> (i32, i32) {
    %c0_i32 = arith.constant 0 : i32
    return %arg0, %arg1 : i32, i32
  }
  func.func @transform_2(%arg0: i32, %arg1: i32) -> (i32, i32) {
    %c0_i32 = arith.constant 0 : i32
    %c0_i32_0 = arith.constant 0 : i32
    return %arg1, %c0_i32 : i32, i32
  }
  func.func @transform_3(%arg0: i32, %arg1: i32) -> (i32, i32) {
    %c0_i32 = arith.constant 0 : i32
    %c0_i32_0 = arith.constant 0 : i32
    return %arg0, %c0_i32 : i32, i32
  }
  func.func @transform_4(%arg0: i32, %arg1: i32) -> (i32, i32) {
    %c0_i32 = arith.constant 0 : i32
    %c0_i32_0 = arith.constant 0 : i32
    %c0_i32_1 = arith.constant 0 : i32
    return %c0_i32, %c0_i32_0 : i32, i32
  }
  func.func @transform_5(%arg0: i32, %arg1: i32) -> (i32, i32) {
    %c0_i32 = arith.constant 0 : i32
    %c0_i32_0 = arith.constant 0 : i32
    %c0_i32_1 = arith.constant 0 : i32
    return %c0_i32, %c0_i32_0 : i32, i32
  }
  func.func @transform_6(%arg0: i32, %arg1: i32) -> (i32, i32) {
    %c0_i32 = arith.constant 0 : i32
    %c0_i32_0 = arith.constant 0 : i32
    %c0_i32_1 = arith.constant 0 : i32
    return %c0_i32, %c0_i32_0 : i32, i32
  }
  func.func @transform_7(%arg0: i32, %arg1: i32) -> (i32, i32) {
    %c0_i32 = arith.constant 0 : i32
    %c0_i32_0 = arith.constant 0 : i32
    %c0_i32_1 = arith.constant 0 : i32
    return %c0_i32, %c0_i32_0 : i32, i32
  }
  func.func @transform_8(%arg0: i32, %arg1: i32) -> (i32, i32) {
    %c0_i32 = arith.constant 0 : i32
    %c0_i32_0 = arith.constant 0 : i32
    return %arg0, %c0_i32 : i32, i32
  }
}

</mosaic_0001>

<llo_original>
// kernel: tpu_custom_call.1
$region0: #{tpu_custom_call.1}
  #allocation0 [shape = 'u32[]', space=smem, size = 0x4, offset = 0x4, fixed_abs, tag = 'smem constant byte address 0x4 - core index']
  #allocation1 [shape = 'u32[144,128]{1,0:T(1,128)}', space=vmem, size = 0x12000, scoped, tag = 'internal scratch']
  #allocation2 [shape = 'f32[128,128]{1,0:T(8,128)}', space=vmem, size = 0x10000, scoped, tag = 'scratch operand']
  #allocation3 [shape = 'f32[1]{0:T(128)S(6)}', space=smem, size = 0x200, scoped, tag = 'scoped memory for tpu_custom_call.1']
  %s0 = inlined_call_operand.<no memory space> [shape: f32[1], index: 0, kind: input, shape index: {}]
  %s1 = inlined_call_operand.hbm [shape: bf16[128,128], index: 1, kind: input, shape index: {}]
  %s2 = inlined_call_operand.hbm [shape: bf16[128,128], index: 2, kind: input, shape index: {}]
  %s3 = inlined_call_operand.hbm [shape: bf16[128,128], index: 3, kind: input, shape index: {}]
  %s4 = inlined_call_operand.hbm [shape: bf16[128,128], index: 4, kind: input, shape index: {}]
  %s5 = inlined_call_operand.vmem [shape: f32[1,128], index: 5, kind: input, shape index: {}]
  %s6 = inlined_call_operand.hbm [shape: bf16[128,128], index: 6, kind: input, shape index: {}]
  %s7 = inlined_call_operand.vmem [shape: f32[1,128], index: 7, kind: input, shape index: {}]
  %s8 = inlined_call_operand.hbm [shape: f32[128,128], index: 8, kind: output, shape index: {}]
  %s9 = sld [smem:[#allocation0]]
  $region70: #{tpu_custom_call.1} parent=0
    _
  %s11 = ssub.s32 1, %s9
  %s12 = scalar_select 0, %s11, %s9
  %13 = sst [smem:[#allocation3]] %s0
  $region1: #{tpu_custom_call.1} parent=0
    #allocation4 [shape = 'u8[32768]{0}', space=vmem, size = 0x8000, scoped, tag = 'input window, operand 1, single buffered']
    #allocation5 [shape = 's32[1]{0}', space=sflag, size = 0x4, scoped, tag = 'scoped memory for tpu_custom_call.1']
    #allocation6 [shape = 's32[1]{0}', space=sflag, size = 0x4, scoped, tag = 'scoped memory for tpu_custom_call.1']
    #allocation7 [shape = 'u8[32768]{0}', space=vmem, size = 0x8000, scoped, tag = 'input window, operand 2, single buffered']
    #allocation8 [shape = 's32[1]{0}', space=sflag, size = 0x4, scoped, tag = 'scoped memory for tpu_custom_call.1']
    #allocation9 [shape = 'u8[32768]{0}', space=vmem, size = 0x8000, scoped, tag = 'input window, operand 3, single buffered']
    #allocation10 [shape = 'u8[32768]{0}', space=vmem, size = 0x8000, scoped, tag = 'input window, operand 4, single buffered']
    #allocation11 [shape = 's32[1]{0}', space=sflag, size = 0x4, scoped, tag = 'scoped memory for tpu_custom_call.1']
    #allocation12 [shape = 'u8[32768]{0}', space=vmem, size = 0x8000, scoped, tag = 'input window, operand 6, single buffered']
    #allocation13 [shape = 'u8[65536]{0}', space=vmem, size = 0x10000, scoped, tag = 'output window, operand 0, single buffered']
    %14 = vsyncpa [#allocation5], 0
    %15 = vsyncpa [#allocation8], 0
    %16 = vsyncpa [#allocation11], 0
    %17 = vsyncpa [#allocation6], 0
    // Predicated region
    $region2: #{tpu_custom_call.1} parent=1 // pred_check
      _
    $region3: #{tpu_custom_call.1} parent=1 // pred_check_branch
      %19 = sbr.rel (0) target = $region5
    $region4: #{tpu_custom_call.1} parent=1 // pred_region
      _
    $region5: #{tpu_custom_call.1} parent=1 // pred_fallthru
      _
    // Predicated region
    $region6: #{tpu_custom_call.1} parent=1 // pred_check
      _
    $region7: #{tpu_custom_call.1} parent=1 // pred_check_branch
      %21 = sbr.rel (0) target = $region9
    $region8: #{tpu_custom_call.1} parent=1 // pred_region
      %s23 = ssub.s32 1024, 1024
      %24 = vsyncadd [#allocation5], %s23
      %s25 = sshll.u32 [#allocation4], 4
      %s26 = int_to_ptr.vmem [resolvable:$true] %s25
      %31 = dma.hbm_to_vmem [thread:$0]  %s1, 1024, %s26, [#allocation5], 64, 64, 4
    $region9: #{tpu_custom_call.1} parent=1 // pred_fallthru
      _
    // Predicated region
    $region10: #{tpu_custom_call.1} parent=1 // pred_check
      _
    $region11: #{tpu_custom_call.1} parent=1 // pred_check_branch
      %33 = sbr.rel (0) target = $region13
    $region12: #{tpu_custom_call.1} parent=1 // pred_region
      %s35 = ssub.s32 1024, 1024
      %36 = vsyncadd [#allocation8], %s35
      %s37 = sshll.u32 [#allocation7], 4
      %s38 = int_to_ptr.vmem [resolvable:$true] %s37
      %43 = dma.hbm_to_vmem [thread:$0]  %s2, 1024, %s38, [#allocation8], 64, 64, 4
    $region13: #{tpu_custom_call.1} parent=1 // pred_fallthru
      _
    // Predicated region
    $region14: #{tpu_custom_call.1} parent=1 // pred_check
      _
    $region15: #{tpu_custom_call.1} parent=1 // pred_check_branch
      %45 = sbr.rel (0) target = $region17
    $region16: #{tpu_custom_call.1} parent=1 // pred_region
      %s47 = ssub.s32 1024, 1024
      %48 = vsyncadd [#allocation8], %s47
      %s49 = sshll.u32 [#allocation9], 4
      %s50 = int_to_ptr.vmem [resolvable:$true] %s49
      %55 = dma.hbm_to_vmem [thread:$0]  %s3, 1024, %s50, [#allocation8], 64, 64, 4
    $region17: #{tpu_custom_call.1} parent=1 // pred_fallthru
      _
    // Predicated region
    $region18: #{tpu_custom_call.1} parent=1 // pred_check
      _
    $region19: #{tpu_custom_call.1} parent=1 // pred_check_branch
      %57 = sbr.rel (0) target = $region21
    $region20: #{tpu_custom_call.1} parent=1 // pred_region
      %s59 = ssub.s32 1024, 1024
      %60 = vsyncadd [#allocation11], %s59
      %s61 = sshll.u32 [#allocation10], 4
      %s62 = int_to_ptr.vmem [resolvable:$true] %s61
      %67 = dma.hbm_to_vmem [thread:$0]  %s4, 1024, %s62, [#allocation11], 64, 64, 4
    $region21: #{tpu_custom_call.1} parent=1 // pred_fallthru
      _
    // Predicated region
    $region22: #{tpu_custom_call.1} parent=1 // pred_check
      _
    $region23: #{tpu_custom_call.1} parent=1 // pred_check_branch
      %69 = sbr.rel (0) target = $region25
    $region24: #{tpu_custom_call.1} parent=1 // pred_region
      _
    $region25: #{tpu_custom_call.1} parent=1 // pred_fallthru
      _
    // Predicated region
    $region26: #{tpu_custom_call.1} parent=1 // pred_check
      _
    $region27: #{tpu_custom_call.1} parent=1 // pred_check_branch
      %71 = sbr.rel (0) target = $region29
    $region28: #{tpu_custom_call.1} parent=1 // pred_region
      %s73 = ssub.s32 1024, 1024
      %74 = vsyncadd [#allocation11], %s73
      %s75 = sshll.u32 [#allocation12], 4
      %s76 = int_to_ptr.vmem [resolvable:$true] %s75
      %81 = dma.hbm_to_vmem [thread:$0]  %s6, 1024, %s76, [#allocation11], 64, 64, 4
    $region29: #{tpu_custom_call.1} parent=1 // pred_fallthru
      _
    // Predicated region
    $region30: #{tpu_custom_call.1} parent=1 // pred_check
      _
    $region31: #{tpu_custom_call.1} parent=1 // pred_check_branch
      %83 = sbr.rel (0) target = $region33
    $region32: #{tpu_custom_call.1} parent=1 // pred_region
      _
    $region33: #{tpu_custom_call.1} parent=1 // pred_fallthru
      _
    // Predicated region
    $region34: #{tpu_custom_call.1} parent=1 // pred_check
      _
    $region35: #{tpu_custom_call.1} parent=1 // pred_check_branch
      %85 = sbr.rel (0) target = $region37
    $region36: #{tpu_custom_call.1} parent=1 // pred_region
      %86 = dma.done [#allocation5], 1024
    $region37: #{tpu_custom_call.1} parent=1 // pred_fallthru
      _
    // Predicated region
    $region38: #{tpu_custom_call.1} parent=1 // pred_check
      _
    $region39: #{tpu_custom_call.1} parent=1 // pred_check_branch
      %88 = sbr.rel (0) target = $region41
    $region40: #{tpu_custom_call.1} parent=1 // pred_region
      %89 = dma.done [#allocation8], 1024
    $region41: #{tpu_custom_call.1} parent=1 // pred_fallthru
      _
    // Predicated region
    $region42: #{tpu_custom_call.1} parent=1 // pred_check
      _
    $region43: #{tpu_custom_call.1} parent=1 // pred_check_branch
      %91 = sbr.rel (0) target = $region45
    $region44: #{tpu_custom_call.1} parent=1 // pred_region
      %92 = dma.done [#allocation8], 1024
    $region45: #{tpu_custom_call.1} parent=1 // pred_fallthru
      _
    // Predicated region
    $region46: #{tpu_custom_call.1} parent=1 // pred_check
      _
    $region47: #{tpu_custom_call.1} parent=1 // pred_check_branch
      %94 = sbr.rel (0) target = $region49
    $region48: #{tpu_custom_call.1} parent=1 // pred_region
      %95 = dma.done [#allocation11], 1024
    $region49: #{tpu_custom_call.1} parent=1 // pred_fallthru
      _
    // Predicated region
    $region50: #{tpu_custom_call.1} parent=1 // pred_check
      _
    $region51: #{tpu_custom_call.1} parent=1 // pred_check_branch
      %97 = sbr.rel (0) target = $region53
    $region52: #{tpu_custom_call.1} parent=1 // pred_region
      %98 = dma.done [#allocation11], 1024
    $region53: #{tpu_custom_call.1} parent=1 // pred_fallthru
      _
    %p100 = scmp.eq.s32.totalorder 0, 0
    // Predicated region
    $region54: #{tpu_custom_call.1} parent=1 // pred_check
      %p101 = pneg %p100
    $region55: #{tpu_custom_call.1} parent=1 // pred_check_branch
      %103 = sbr.rel (%p101) target = $region57
    $region56: #{tpu_custom_call.1} parent=1 // pred_region
      %104 = vst [vmem:[#allocation2] sm:$0xff] 0.0
      %105 = vst [vmem:[#allocation2 + $0x8] sm:$0xff] 0.0
      %106 = vst [vmem:[#allocation2 + $0x10] sm:$0xff] 0.0
      %107 = vst [vmem:[#allocation2 + $0x18] sm:$0xff] 0.0
      %108 = vst [vmem:[#allocation2 + $0x20] sm:$0xff] 0.0
      %109 = vst [vmem:[#allocation2 + $0x28] sm:$0xff] 0.0
      %110 = vst [vmem:[#allocation2 + $0x30] sm:$0xff] 0.0
      %111 = vst [vmem:[#allocation2 + $0x38] sm:$0xff] 0.0
      %112 = vst [vmem:[#allocation2 + $0x40] sm:$0xff] 0.0
      %113 = vst [vmem:[#allocation2 + $0x48] sm:$0xff] 0.0
      %114 = vst [vmem:[#allocation2 + $0x50] sm:$0xff] 0.0
      %115 = vst [vmem:[#allocation2 + $0x58] sm:$0xff] 0.0
      %116 = vst [vmem:[#allocation2 + $0x60] sm:$0xff] 0.0
      %117 = vst [vmem:[#allocation2 + $0x68] sm:$0xff] 0.0
      %118 = vst [vmem:[#allocation2 + $0x70] sm:$0xff] 0.0
      %119 = vst [vmem:[#allocation2 + $0x78] sm:$0xff] 0.0
    $region57: #{tpu_custom_call.1} parent=1 // pred_fallthru
      _
    %v120 = vld [vmem:[#allocation2] sm:$0xff]
    %v121 = vld [vmem:[#allocation2 + $0x8] sm:$0xff]
    %v122 = vld [vmem:[#allocation2 + $0x10] sm:$0xff]
    %v123 = vld [vmem:[#allocation2 + $0x18] sm:$0xff]
    %v124 = vld [vmem:[#allocation2 + $0x20] sm:$0xff]
    %v125 = vld [vmem:[#allocation2 + $0x28] sm:$0xff]
    %v126 = vld [vmem:[#allocation2 + $0x30] sm:$0xff]
    %v127 = vld [vmem:[#allocation2 + $0x38] sm:$0xff]
    %v128 = vld [vmem:[#allocation2 + $0x40] sm:$0xff]
    %v129 = vld [vmem:[#allocation2 + $0x48] sm:$0xff]
    %v130 = vld [vmem:[#allocation2 + $0x50] sm:$0xff]
    %v131 = vld [vmem:[#allocation2 + $0x58] sm:$0xff]
    %v132 = vld [vmem:[#allocation2 + $0x60] sm:$0xff]
    %v133 = vld [vmem:[#allocation2 + $0x68] sm:$0xff]
    %v134 = vld [vmem:[#allocation2 + $0x70] sm:$0xff]
    %v135 = vld [vmem:[#allocation2 + $0x78] sm:$0xff]
    %v136 = vld [vmem:[#allocation4] sm:$0xf]
    %v137 = vld [vmem:[#allocation4 + $0x4] sm:$0xf]
    %v138 = vld [vmem:[#allocation4 + $0x8] sm:$0xf]
    %v139 = vld [vmem:[#allocation4 + $0xc] sm:$0xf]
    %v140 = vld [vmem:[#allocation4 + $0x10] sm:$0xf]
    %v141 = vld [vmem:[#allocation4 + $0x14] sm:$0xf]
    %v142 = vld [vmem:[#allocation4 + $0x18] sm:$0xf]
    %v143 = vld [vmem:[#allocation4 + $0x1c] sm:$0xf]
    %v144 = vld [vmem:[#allocation4 + $0x20] sm:$0xf]
    %v145 = vld [vmem:[#allocation4 + $0x24] sm:$0xf]
    %v146 = vld [vmem:[#allocation4 + $0x28] sm:$0xf]
    %v147 = vld [vmem:[#allocation4 + $0x2c] sm:$0xf]
    %v148 = vld [vmem:[#allocation4 + $0x30] sm:$0xf]
    %v149 = vld [vmem:[#allocation4 + $0x34] sm:$0xf]
    %v150 = vld [vmem:[#allocation4 + $0x38] sm:$0xf]
    %v151 = vld [vmem:[#allocation4 + $0x3c] sm:$0xf]
    %v152 = vld [vmem:[#allocation7] sm:$0xf]
    %v153 = vld [vmem:[#allocation7 + $0x4] sm:$0xf]
    %v154 = vld [vmem:[#allocation7 + $0x8] sm:$0xf]
    %v155 = vld [vmem:[#allocation7 + $0xc] sm:$0xf]
    %v156 = vld [vmem:[#allocation7 + $0x10] sm:$0xf]
    %v157 = vld [vmem:[#allocation7 + $0x14] sm:$0xf]
    %v158 = vld [vmem:[#allocation7 + $0x18] sm:$0xf]
    %v159 = vld [vmem:[#allocation7 + $0x1c] sm:$0xf]
    %v160 = vld [vmem:[#allocation7 + $0x20] sm:$0xf]
    %v161 = vld [vmem:[#allocation7 + $0x24] sm:$0xf]
    %v162 = vld [vmem:[#allocation7 + $0x28] sm:$0xf]
    %v163 = vld [vmem:[#allocation7 + $0x2c] sm:$0xf]
    %v164 = vld [vmem:[#allocation7 + $0x30] sm:$0xf]
    %v165 = vld [vmem:[#allocation7 + $0x34] sm:$0xf]
    %v166 = vld [vmem:[#allocation7 + $0x38] sm:$0xf]
    %v167 = vld [vmem:[#allocation7 + $0x3c] sm:$0xf]
    %v184 = vunpack.c.l.b16 %v136
    %v185 = vunpack.c.l.b16 %v137
    %v186 = vunpack.c.l.b16 %v138
    %v187 = vunpack.c.l.b16 %v139
    %v188 = vunpack.c.l.b16 %v140
    %v189 = vunpack.c.l.b16 %v141
    %v190 = vunpack.c.l.b16 %v142
    %v191 = vunpack.c.l.b16 %v143
    %v192 = vunpack.c.l.b16 %v144
    %v193 = vunpack.c.l.b16 %v145
    %v194 = vunpack.c.l.b16 %v146
    %v195 = vunpack.c.l.b16 %v147
    %v196 = vunpack.c.l.b16 %v148
    %v197 = vunpack.c.l.b16 %v149
    %v198 = vunpack.c.l.b16 %v150
    %v199 = vunpack.c.l.b16 %v151
    %v200 = vpack.c.b16 %v185, %v184
    %v201 = vpack.c.b16 %v187, %v186
    %v202 = vpack.c.b16 %v189, %v188
    %v203 = vpack.c.b16 %v191, %v190
    %v204 = vpack.c.b16 %v193, %v192
    %v205 = vpack.c.b16 %v195, %v194
    %v206 = vpack.c.b16 %v197, %v196
    %v207 = vpack.c.b16 %v199, %v198
    %v232 = vunpack.c.l.b16 %v152
    %v233 = vunpack.c.l.b16 %v153
    %v234 = vunpack.c.l.b16 %v154
    %v235 = vunpack.c.l.b16 %v155
    %v236 = vunpack.c.l.b16 %v156
    %v237 = vunpack.c.l.b16 %v157
    %v238 = vunpack.c.l.b16 %v158
    %v239 = vunpack.c.l.b16 %v159
    %v240 = vunpack.c.l.b16 %v160
    %v241 = vunpack.c.l.b16 %v161
    %v242 = vunpack.c.l.b16 %v162
    %v243 = vunpack.c.l.b16 %v163
    %v244 = vunpack.c.l.b16 %v164
    %v245 = vunpack.c.l.b16 %v165
    %v246 = vunpack.c.l.b16 %v166
    %v247 = vunpack.c.l.b16 %v167
    %v248 = vpack.c.b16 %v233, %v232
    %v249 = vpack.c.b16 %v235, %v234
    %v250 = vpack.c.b16 %v237, %v236
    %v251 = vpack.c.b16 %v239, %v238
    %v252 = vpack.c.b16 %v241, %v240
    %v253 = vpack.c.b16 %v243, %v242
    %v254 = vpack.c.b16 %v245, %v244
    %v255 = vpack.c.b16 %v247, %v246
    %264 = vmatprep.subr.bf16.mxu0 0
    %265 = vmatpush1.bf16.msra.mxu0 %v255
    %266 = vmatprep.subr.bf16.mxu0 0
    %267 = vmatpush1.bf16.msra.mxu0 %v254
    %268 = vmatprep.subr.bf16.mxu0 0
    %269 = vmatpush1.bf16.msra.mxu0 %v253
    %270 = vmatprep.subr.bf16.mxu0 0
    %271 = vmatpush1.bf16.msra.mxu0 %v252
    %272 = vmatprep.subr.bf16.mxu0 0
    %273 = vmatpush1.bf16.msra.mxu0 %v251
    %274 = vmatprep.subr.bf16.mxu0 0
    %275 = vmatpush1.bf16.msra.mxu0 %v250
    %276 = vmatprep.subr.bf16.mxu0 0
    %277 = vmatpush1.bf16.msra.mxu0 %v249
    %278 = vmatprep.subr.bf16.mxu0 0
    %279 = vmatpush1.bf16.msra.mxu0 %v248
    %280 = vmatprep.subr.bf16.mxu0 0
    %281 = vmatpush2.bf16.msra.mxu0 0
    %282 = vmatprep.subr.bf16.mxu0 0
    %283 = vmatpush2.bf16.msra.mxu0 0
    %284 = vmatprep.subr.bf16.mxu0 0
    %285 = vmatpush2.bf16.msra.mxu0 0
    %286 = vmatprep.subr.bf16.mxu0 0
    %287 = vmatpush2.bf16.msra.mxu0 0
    %288 = vmatprep.subr.bf16.mxu0 0
    %289 = vmatpush2.bf16.msra.mxu0 0
    %290 = vmatprep.subr.bf16.mxu0 0
    %291 = vmatpush2.bf16.msra.mxu0 0
    %292 = vmatprep.subr.bf16.mxu0 0
    %293 = vmatpush2.bf16.msra.mxu0 0
    %294 = vmatprep.subr.bf16.mxu0 0
    %295 = vmatpush2.bf16.msra.mxu0 0
    %296 = vmatprep.mubr.bf16.mxu0 0
    %297 = vmatmul.mubr.bf16.gmra.mxu0 %v200
    %v298 = vpop.f32.mrf.mxu0
    %v299 = vadd.f32 0.0, %v298
    %v300 = vpop.f32.mrf.mxu0
    %v301 = vpop.f32.mrf.mxu0
    %v302 = vadd.f32 0.0, %v301
    %v303 = vpop.f32.mrf.mxu0
    %304 = vmatprep.mubr.bf16.mxu0 0
    %305 = vmatmul.mubr.bf16.gmra.mxu0 %v201
    %v306 = vpop.f32.mrf.mxu0
    %v307 = vadd.f32 0.0, %v306
    %v308 = vpop.f32.mrf.mxu0
    %v309 = vpop.f32.mrf.mxu0
    %v310 = vadd.f32 0.0, %v309
    %v311 = vpop.f32.mrf.mxu0
    %312 = vmatprep.mubr.bf16.mxu0 0
    %313 = vmatmul.mubr.bf16.gmra.mxu0 %v202
    %v314 = vpop.f32.mrf.mxu0
    %v315 = vadd.f32 0.0, %v314
    %v316 = vpop.f32.mrf.mxu0
    %v317 = vpop.f32.mrf.mxu0
    %v318 = vadd.f32 0.0, %v317
    %v319 = vpop.f32.mrf.mxu0
    %320 = vmatprep.mubr.bf16.mxu0 0
    %321 = vmatmul.mubr.bf16.gmra.mxu0 %v203
    %v322 = vpop.f32.mrf.mxu0
    %v323 = vadd.f32 0.0, %v322
    %v324 = vpop.f32.mrf.mxu0
    %v325 = vpop.f32.mrf.mxu0
    %v326 = vadd.f32 0.0, %v325
    %v327 = vpop.f32.mrf.mxu0
    %328 = vmatprep.mubr.bf16.mxu0 0
    %329 = vmatmul.mubr.bf16.gmra.mxu0 %v204
    %v330 = vpop.f32.mrf.mxu0
    %v331 = vadd.f32 0.0, %v330
    %v332 = vpop.f32.mrf.mxu0
    %v333 = vpop.f32.mrf.mxu0
    %v334 = vadd.f32 0.0, %v333
    %v335 = vpop.f32.mrf.mxu0
    %336 = vmatprep.mubr.bf16.mxu0 0
    %337 = vmatmul.mubr.bf16.gmra.mxu0 %v205
    %v338 = vpop.f32.mrf.mxu0
    %v339 = vadd.f32 0.0, %v338
    %v340 = vpop.f32.mrf.mxu0
    %v341 = vpop.f32.mrf.mxu0
    %v342 = vadd.f32 0.0, %v341
    %v343 = vpop.f32.mrf.mxu0
    %344 = vmatprep.mubr.bf16.mxu0 0
    %345 = vmatmul.mubr.bf16.gmra.mxu0 %v206
    %v346 = vpop.f32.mrf.mxu0
    %v347 = vadd.f32 0.0, %v346
    %v348 = vpop.f32.mrf.mxu0
    %v349 = vpop.f32.mrf.mxu0
    %v350 = vadd.f32 0.0, %v349
    %v351 = vpop.f32.mrf.mxu0
    %352 = vmatprep.mubr.bf16.mxu0 0
    %353 = vmatmul.mubr.bf16.gmra.mxu0 %v207
    %v354 = vpop.f32.mrf.mxu0
    %v355 = vadd.f32 0.0, %v354
    %v356 = vpop.f32.mrf.mxu0
    %v357 = vpop.f32.mrf.mxu0
    %v358 = vadd.f32 0.0, %v357
    %v359 = vpop.f32.mrf.mxu0
    %360 = vdwg.mxu0
    %v361 = vadd.f32 %v120, %v299
    %v362 = vadd.f32 %v121, %v302
    %v363 = vadd.f32 %v122, %v307
    %v364 = vadd.f32 %v123, %v310
    %v365 = vadd.f32 %v124, %v315
    %v366 = vadd.f32 %v125, %v318
    %v367 = vadd.f32 %v126, %v323
    %v368 = vadd.f32 %v127, %v326
    %v369 = vadd.f32 %v128, %v331
    %v370 = vadd.f32 %v129, %v334
    %v371 = vadd.f32 %v130, %v339
    %v372 = vadd.f32 %v131, %v342
    %v373 = vadd.f32 %v132, %v347
    %v374 = vadd.f32 %v133, %v350
    %v375 = vadd.f32 %v134, %v355
    %v376 = vadd.f32 %v135, %v358
    %377 = vst [vmem:[#allocation2] sm:$0xff] %v361
    %378 = vst [vmem:[#allocation2 + $0x8] sm:$0xff] %v362
    %379 = vst [vmem:[#allocation2 + $0x10] sm:$0xff] %v363
    %380 = vst [vmem:[#allocation2 + $0x18] sm:$0xff] %v364
    %381 = vst [vmem:[#allocation2 + $0x20] sm:$0xff] %v365
    %382 = vst [vmem:[#allocation2 + $0x28] sm:$0xff] %v366
    %383 = vst [vmem:[#allocation2 + $0x30] sm:$0xff] %v367
    %384 = vst [vmem:[#allocation2 + $0x38] sm:$0xff] %v368
    %385 = vst [vmem:[#allocation2 + $0x40] sm:$0xff] %v369
    %386 = vst [vmem:[#allocation2 + $0x48] sm:$0xff] %v370
    %387 = vst [vmem:[#allocation2 + $0x50] sm:$0xff] %v371
    %388 = vst [vmem:[#allocation2 + $0x58] sm:$0xff] %v372
    %389 = vst [vmem:[#allocation2 + $0x60] sm:$0xff] %v373
    %390 = vst [vmem:[#allocation2 + $0x68] sm:$0xff] %v374
    %391 = vst [vmem:[#allocation2 + $0x70] sm:$0xff] %v375
    %392 = vst [vmem:[#allocation2 + $0x78] sm:$0xff] %v376
    // Predicated region
    $region58: #{tpu_custom_call.1} parent=1 // pred_check
      %p393 = pneg %p100
    $region59: #{tpu_custom_call.1} parent=1 // pred_check_branch
      %395 = sbr.rel (%p393) target = $region61
    $region60: #{tpu_custom_call.1} parent=1 // pred_region
      %s396 = sld [smem:[#allocation3]]
      %s397 = sadd.f32 %s396, 1.0
      %v398 = vld [vmem:[#allocation9] sm:$0xf]
      %v399 = vld [vmem:[#allocation9 + $0x4] sm:$0xf]
      %v400 = vld [vmem:[#allocation9 + $0x8] sm:$0xf]
      %v401 = vld [vmem:[#allocation9 + $0xc] sm:$0xf]
      %v402 = vld [vmem:[#allocation9 + $0x10] sm:$0xf]
      %v403 = vld [vmem:[#allocation9 + $0x14] sm:$0xf]
      %v404 = vld [vmem:[#allocation9 + $0x18] sm:$0xf]
      %v405 = vld [vmem:[#allocation9 + $0x1c] sm:$0xf]
      %v406 = vld [vmem:[#allocation9 + $0x20] sm:$0xf]
      %v407 = vld [vmem:[#allocation9 + $0x24] sm:$0xf]
      %v408 = vld [vmem:[#allocation9 + $0x28] sm:$0xf]
      %v409 = vld [vmem:[#allocation9 + $0x2c] sm:$0xf]
      %v410 = vld [vmem:[#allocation9 + $0x30] sm:$0xf]
      %v411 = vld [vmem:[#allocation9 + $0x34] sm:$0xf]
      %v412 = vld [vmem:[#allocation9 + $0x38] sm:$0xf]
      %v413 = vld [vmem:[#allocation9 + $0x3c] sm:$0xf]
      %v414 = vunpack.c.l.bf16 %v398
      %v415 = vunpack.c.l.bf16 %v399
      %v416 = vunpack.c.l.bf16 %v400
      %v417 = vunpack.c.l.bf16 %v401
      %v418 = vunpack.c.l.bf16 %v402
      %v419 = vunpack.c.l.bf16 %v403
      %v420 = vunpack.c.l.bf16 %v404
      %v421 = vunpack.c.l.bf16 %v405
      %v422 = vunpack.c.l.bf16 %v406
      %v423 = vunpack.c.l.bf16 %v407
      %v424 = vunpack.c.l.bf16 %v408
      %v425 = vunpack.c.l.bf16 %v409
      %v426 = vunpack.c.l.bf16 %v410
      %v427 = vunpack.c.l.bf16 %v411
      %v428 = vunpack.c.l.bf16 %v412
      %v429 = vunpack.c.l.bf16 %v413
      %v430 = vstv %s397
      %v431 = vmul.f32 %v430, %v414
      %v432 = vmul.f32 %v430, %v415
      %v433 = vmul.f32 %v430, %v416
      %v434 = vmul.f32 %v430, %v417
      %v435 = vmul.f32 %v430, %v418
      %v436 = vmul.f32 %v430, %v419
      %v437 = vmul.f32 %v430, %v420
      %v438 = vmul.f32 %v430, %v421
      %v439 = vmul.f32 %v430, %v422
      %v440 = vmul.f32 %v430, %v423
      %v441 = vmul.f32 %v430, %v424
      %v442 = vmul.f32 %v430, %v425
      %v443 = vmul.f32 %v430, %v426
      %v444 = vmul.f32 %v430, %v427
      %v445 = vmul.f32 %v430, %v428
      %v446 = vmul.f32 %v430, %v429
      %v447 = vld [vmem:[#allocation2] sm:$0xff]
      %v448 = vld [vmem:[#allocation2 + $0x8] sm:$0xff]
      %v449 = vld [vmem:[#allocation2 + $0x10] sm:$0xff]
      %v450 = vld [vmem:[#allocation2 + $0x18] sm:$0xff]
      %v451 = vld [vmem:[#allocation2 + $0x20] sm:$0xff]
      %v452 = vld [vmem:[#allocation2 + $0x28] sm:$0xff]
      %v453 = vld [vmem:[#allocation2 + $0x30] sm:$0xff]
      %v454 = vld [vmem:[#allocation2 + $0x38] sm:$0xff]
      %v455 = vld [vmem:[#allocation2 + $0x40] sm:$0xff]
      %v456 = vld [vmem:[#allocation2 + $0x48] sm:$0xff]
      %v457 = vld [vmem:[#allocation2 + $0x50] sm:$0xff]
      %v458 = vld [vmem:[#allocation2 + $0x58] sm:$0xff]
      %v459 = vld [vmem:[#allocation2 + $0x60] sm:$0xff]
      %v460 = vld [vmem:[#allocation2 + $0x68] sm:$0xff]
      %v461 = vld [vmem:[#allocation2 + $0x70] sm:$0xff]
      %v462 = vld [vmem:[#allocation2 + $0x78] sm:$0xff]
      %v463 = vadd.f32 %v431, %v447
      %v464 = vadd.f32 %v432, %v448
      %v465 = vadd.f32 %v433, %v449
      %v466 = vadd.f32 %v434, %v450
      %v467 = vadd.f32 %v435, %v451
      %v468 = vadd.f32 %v436, %v452
      %v469 = vadd.f32 %v437, %v453
      %v470 = vadd.f32 %v438, %v454
      %v471 = vadd.f32 %v439, %v455
      %v472 = vadd.f32 %v440, %v456
      %v473 = vadd.f32 %v441, %v457
      %v474 = vadd.f32 %v442, %v458
      %v475 = vadd.f32 %v443, %v459
      %v476 = vadd.f32 %v444, %v460
      %v477 = vadd.f32 %v445, %v461
      %v478 = vadd.f32 %v446, %v462
      %v479 = vpack.c.bf16 %v464, %v463
      %v480 = vpack.c.bf16 %v466, %v465
      %v481 = vpack.c.bf16 %v468, %v467
      %v482 = vpack.c.bf16 %v470, %v469
      %v483 = vpack.c.bf16 %v472, %v471
      %v484 = vpack.c.bf16 %v474, %v473
      %v485 = vpack.c.bf16 %v476, %v475
      %v486 = vpack.c.bf16 %v478, %v477
      %v487 = vld [vmem:[#allocation10] sm:$0xf]
      %v488 = vld [vmem:[#allocation10 + $0x4] sm:$0xf]
      %v489 = vld [vmem:[#allocation10 + $0x8] sm:$0xf]
      %v490 = vld [vmem:[#allocation10 + $0xc] sm:$0xf]
      %v491 = vld [vmem:[#allocation10 + $0x10] sm:$0xf]
      %v492 = vld [vmem:[#allocation10 + $0x14] sm:$0xf]
      %v493 = vld [vmem:[#allocation10 + $0x18] sm:$0xf]
      %v494 = vld [vmem:[#allocation10 + $0x1c] sm:$0xf]
      %v495 = vld [vmem:[#allocation10 + $0x20] sm:$0xf]
      %v496 = vld [vmem:[#allocation10 + $0x24] sm:$0xf]
      %v497 = vld [vmem:[#allocation10 + $0x28] sm:$0xf]
      %v498 = vld [vmem:[#allocation10 + $0x2c] sm:$0xf]
      %v499 = vld [vmem:[#allocation10 + $0x30] sm:$0xf]
      %v500 = vld [vmem:[#allocation10 + $0x34] sm:$0xf]
      %v501 = vld [vmem:[#allocation10 + $0x38] sm:$0xf]
      %v502 = vld [vmem:[#allocation10 + $0x3c] sm:$0xf]
      %v503 = vld [vmem:[%s5] sm:$0x1]
      %v505 = vlaneseq
      %v506 = vshrl.u32 %v505, 7
      %v507 = vsub.s32 0, %v506
      %v508 = vrot.slane %v503, %v507
      %v526 = vunpack.c.l.b16 %v487
      %v527 = vunpack.c.l.b16 %v488
      %v528 = vunpack.c.l.b16 %v489
      %v529 = vunpack.c.l.b16 %v490
      %v530 = vunpack.c.l.b16 %v491
      %v531 = vunpack.c.l.b16 %v492
      %v532 = vunpack.c.l.b16 %v493
      %v533 = vunpack.c.l.b16 %v494
      %v534 = vunpack.c.l.b16 %v495
      %v535 = vunpack.c.l.b16 %v496
      %v536 = vunpack.c.l.b16 %v497
      %v537 = vunpack.c.l.b16 %v498
      %v538 = vunpack.c.l.b16 %v499
      %v539 = vunpack.c.l.b16 %v500
      %v540 = vunpack.c.l.b16 %v501
      %v541 = vunpack.c.l.b16 %v502
      %v542 = vpack.c.b16 %v527, %v526
      %v543 = vpack.c.b16 %v529, %v528
      %v544 = vpack.c.b16 %v531, %v530
      %v545 = vpack.c.b16 %v533, %v532
      %v546 = vpack.c.b16 %v535, %v534
      %v547 = vpack.c.b16 %v537, %v536
      %v548 = vpack.c.b16 %v539, %v538
      %v549 = vpack.c.b16 %v541, %v540
      %558 = vmatprep.subr.bf16.mxu0 0
      %559 = vmatpush1.bf16.msra.mxu0 %v549
      %560 = vmatprep.subr.bf16.mxu0 0
      %561 = vmatpush1.bf16.msra.mxu0 %v548
      %562 = vmatprep.subr.bf16.mxu0 0
      %563 = vmatpush1.bf16.msra.mxu0 %v547
      %564 = vmatprep.subr.bf16.mxu0 0
      %565 = vmatpush1.bf16.msra.mxu0 %v546
      %566 = vmatprep.subr.bf16.mxu0 0
      %567 = vmatpush1.bf16.msra.mxu0 %v545
      %568 = vmatprep.subr.bf16.mxu0 0
      %569 = vmatpush1.bf16.msra.mxu0 %v544
      %570 = vmatprep.subr.bf16.mxu0 0
      %571 = vmatpush1.bf16.msra.mxu0 %v543
      %572 = vmatprep.subr.bf16.mxu0 0
      %573 = vmatpush1.bf16.msra.mxu0 %v542
      %574 = vmatprep.subr.bf16.mxu0 0
      %575 = vmatpush2.bf16.msra.mxu0 0
      %576 = vmatprep.subr.bf16.mxu0 0
      %577 = vmatpush2.bf16.msra.mxu0 0
      %578 = vmatprep.subr.bf16.mxu0 0
      %579 = vmatpush2.bf16.msra.mxu0 0
      %580 = vmatprep.subr.bf16.mxu0 0
      %581 = vmatpush2.bf16.msra.mxu0 0
      %582 = vmatprep.subr.bf16.mxu0 0
      %583 = vmatpush2.bf16.msra.mxu0 0
      %584 = vmatprep.subr.bf16.mxu0 0
      %585 = vmatpush2.bf16.msra.mxu0 0
      %586 = vmatprep.subr.bf16.mxu0 0
      %587 = vmatpush2.bf16.msra.mxu0 0
      %588 = vmatprep.subr.bf16.mxu0 0
      %589 = vmatpush2.bf16.msra.mxu0 0
      %590 = vmatprep.mubr.bf16.mxu0 0
      %591 = vmatmul.mubr.bf16.gmra.mxu0 %v479
      %v592 = vpop.f32.mrf.mxu0
      %v593 = vadd.f32 %v508, %v592
      %v594 = vpop.f32.mrf.mxu0
      %v595 = vpop.f32.mrf.mxu0
      %v596 = vadd.f32 %v508, %v595
      %v597 = vpop.f32.mrf.mxu0
      %598 = vmatprep.mubr.bf16.mxu0 0
      %599 = vmatmul.mubr.bf16.gmra.mxu0 %v480
      %v600 = vpop.f32.mrf.mxu0
      %v601 = vadd.f32 %v508, %v600
      %v602 = vpop.f32.mrf.mxu0
      %v603 = vpop.f32.mrf.mxu0
      %v604 = vadd.f32 %v508, %v603
      %v605 = vpop.f32.mrf.mxu0
      %606 = vmatprep.mubr.bf16.mxu0 0
      %607 = vmatmul.mubr.bf16.gmra.mxu0 %v481
      %v608 = vpop.f32.mrf.mxu0
      %v609 = vadd.f32 %v508, %v608
      %v610 = vpop.f32.mrf.mxu0
      %v611 = vpop.f32.mrf.mxu0
      %v612 = vadd.f32 %v508, %v611
      %v613 = vpop.f32.mrf.mxu0
      %614 = vmatprep.mubr.bf16.mxu0 0
      %615 = vmatmul.mubr.bf16.gmra.mxu0 %v482
      %v616 = vpop.f32.mrf.mxu0
      %v617 = vadd.f32 %v508, %v616
      %v618 = vpop.f32.mrf.mxu0
      %v619 = vpop.f32.mrf.mxu0
      %v620 = vadd.f32 %v508, %v619
      %v621 = vpop.f32.mrf.mxu0
      %622 = vmatprep.mubr.bf16.mxu0 0
      %623 = vmatmul.mubr.bf16.gmra.mxu0 %v483
      %v624 = vpop.f32.mrf.mxu0
      %v625 = vadd.f32 %v508, %v624
      %v626 = vpop.f32.mrf.mxu0
      %v627 = vpop.f32.mrf.mxu0
      %v628 = vadd.f32 %v508, %v627
      %v629 = vpop.f32.mrf.mxu0
      %630 = vmatprep.mubr.bf16.mxu0 0
      %631 = vmatmul.mubr.bf16.gmra.mxu0 %v484
      %v632 = vpop.f32.mrf.mxu0
      %v633 = vadd.f32 %v508, %v632
      %v634 = vpop.f32.mrf.mxu0
      %v635 = vpop.f32.mrf.mxu0
      %v636 = vadd.f32 %v508, %v635
      %v637 = vpop.f32.mrf.mxu0
      %638 = vmatprep.mubr.bf16.mxu0 0
      %639 = vmatmul.mubr.bf16.gmra.mxu0 %v485
      %v640 = vpop.f32.mrf.mxu0
      %v641 = vadd.f32 %v508, %v640
      %v642 = vpop.f32.mrf.mxu0
      %v643 = vpop.f32.mrf.mxu0
      %v644 = vadd.f32 %v508, %v643
      %v645 = vpop.f32.mrf.mxu0
      %646 = vmatprep.mubr.bf16.mxu0 0
      %647 = vmatmul.mubr.bf16.gmra.mxu0 %v486
      %v648 = vpop.f32.mrf.mxu0
      %v649 = vadd.f32 %v508, %v648
      %v650 = vpop.f32.mrf.mxu0
      %v651 = vpop.f32.mrf.mxu0
      %v652 = vadd.f32 %v508, %v651
      %v653 = vpop.f32.mrf.mxu0
      %654 = vdwg.mxu0
      %v655 = vmax.f32 %v593, 0.0
      %v656 = vmax.f32 %v596, 0.0
      %v657 = vmax.f32 %v601, 0.0
      %v658 = vmax.f32 %v604, 0.0
      %v659 = vmax.f32 %v609, 0.0
      %v660 = vmax.f32 %v612, 0.0
      %v661 = vmax.f32 %v617, 0.0
      %v662 = vmax.f32 %v620, 0.0
      %v663 = vmax.f32 %v625, 0.0
      %v664 = vmax.f32 %v628, 0.0
      %v665 = vmax.f32 %v633, 0.0
      %v666 = vmax.f32 %v636, 0.0
      %v667 = vmax.f32 %v641, 0.0
      %v668 = vmax.f32 %v644, 0.0
      %v669 = vmax.f32 %v649, 0.0
      %v670 = vmax.f32 %v652, 0.0
      %v671 = vpack.c.bf16 %v656, %v655
      %v672 = vpack.c.bf16 %v658, %v657
      %v673 = vpack.c.bf16 %v660, %v659
      %v674 = vpack.c.bf16 %v662, %v661
      %v675 = vpack.c.bf16 %v664, %v663
      %v676 = vpack.c.bf16 %v666, %v665
      %v677 = vpack.c.bf16 %v668, %v667
      %v678 = vpack.c.bf16 %v670, %v669
      %v679 = vld [vmem:[#allocation12] sm:$0xf]
      %v680 = vld [vmem:[#allocation12 + $0x4] sm:$0xf]
      %v681 = vld [vmem:[#allocation12 + $0x8] sm:$0xf]
      %v682 = vld [vmem:[#allocation12 + $0xc] sm:$0xf]
      %v683 = vld [vmem:[#allocation12 + $0x10] sm:$0xf]
      %v684 = vld [vmem:[#allocation12 + $0x14] sm:$0xf]
      %v685 = vld [vmem:[#allocation12 + $0x18] sm:$0xf]
      %v686 = vld [vmem:[#allocation12 + $0x1c] sm:$0xf]
      %v687 = vld [vmem:[#allocation12 + $0x20] sm:$0xf]
      %v688 = vld [vmem:[#allocation12 + $0x24] sm:$0xf]
      %v689 = vld [vmem:[#allocation12 + $0x28] sm:$0xf]
      %v690 = vld [vmem:[#allocation12 + $0x2c] sm:$0xf]
      %v691 = vld [vmem:[#allocation12 + $0x30] sm:$0xf]
      %v692 = vld [vmem:[#allocation12 + $0x34] sm:$0xf]
      %v693 = vld [vmem:[#allocation12 + $0x38] sm:$0xf]
      %v694 = vld [vmem:[#allocation12 + $0x3c] sm:$0xf]
      %v695 = vld [vmem:[%s7] sm:$0x1]
      %v697 = vlaneseq
      %v698 = vshrl.u32 %v697, 7
      %v699 = vsub.s32 0, %v698
      %v700 = vrot.slane %v695, %v699
      %v718 = vunpack.c.l.b16 %v679
      %v719 = vunpack.c.l.b16 %v680
      %v720 = vunpack.c.l.b16 %v681
      %v721 = vunpack.c.l.b16 %v682
      %v722 = vunpack.c.l.b16 %v683
      %v723 = vunpack.c.l.b16 %v684
      %v724 = vunpack.c.l.b16 %v685
      %v725 = vunpack.c.l.b16 %v686
      %v726 = vunpack.c.l.b16 %v687
      %v727 = vunpack.c.l.b16 %v688
      %v728 = vunpack.c.l.b16 %v689
      %v729 = vunpack.c.l.b16 %v690
      %v730 = vunpack.c.l.b16 %v691
      %v731 = vunpack.c.l.b16 %v692
      %v732 = vunpack.c.l.b16 %v693
      %v733 = vunpack.c.l.b16 %v694
      %v734 = vpack.c.b16 %v719, %v718
      %v735 = vpack.c.b16 %v721, %v720
      %v736 = vpack.c.b16 %v723, %v722
      %v737 = vpack.c.b16 %v725, %v724
      %v738 = vpack.c.b16 %v727, %v726
      %v739 = vpack.c.b16 %v729, %v728
      %v740 = vpack.c.b16 %v731, %v730
      %v741 = vpack.c.b16 %v733, %v732
      %750 = vmatprep.subr.bf16.mxu0 0
      %751 = vmatpush1.bf16.msra.mxu0 %v741
      %752 = vmatprep.subr.bf16.mxu0 0
      %753 = vmatpush1.bf16.msra.mxu0 %v740
      %754 = vmatprep.subr.bf16.mxu0 0
      %755 = vmatpush1.bf16.msra.mxu0 %v739
      %756 = vmatprep.subr.bf16.mxu0 0
      %757 = vmatpush1.bf16.msra.mxu0 %v738
      %758 = vmatprep.subr.bf16.mxu0 0
      %759 = vmatpush1.bf16.msra.mxu0 %v737
      %760 = vmatprep.subr.bf16.mxu0 0
      %761 = vmatpush1.bf16.msra.mxu0 %v736
      %762 = vmatprep.subr.bf16.mxu0 0
      %763 = vmatpush1.bf16.msra.mxu0 %v735
      %764 = vmatprep.subr.bf16.mxu0 0
      %765 = vmatpush1.bf16.msra.mxu0 %v734
      %766 = vmatprep.subr.bf16.mxu0 0
      %767 = vmatpush2.bf16.msra.mxu0 0
      %768 = vmatprep.subr.bf16.mxu0 0
      %769 = vmatpush2.bf16.msra.mxu0 0
      %770 = vmatprep.subr.bf16.mxu0 0
      %771 = vmatpush2.bf16.msra.mxu0 0
      %772 = vmatprep.subr.bf16.mxu0 0
      %773 = vmatpush2.bf16.msra.mxu0 0
      %774 = vmatprep.subr.bf16.mxu0 0
      %775 = vmatpush2.bf16.msra.mxu0 0
      %776 = vmatprep.subr.bf16.mxu0 0
      %777 = vmatpush2.bf16.msra.mxu0 0
      %778 = vmatprep.subr.bf16.mxu0 0
      %779 = vmatpush2.bf16.msra.mxu0 0
      %780 = vmatprep.subr.bf16.mxu0 0
      %781 = vmatpush2.bf16.msra.mxu0 0
      %782 = vmatprep.mubr.bf16.mxu0 0
      %783 = vmatmul.mubr.bf16.gmra.mxu0 %v671
      %v784 = vpop.f32.mrf.mxu0
      %v785 = vadd.f32 %v700, %v784
      %v786 = vpop.f32.mrf.mxu0
      %v787 = vpop.f32.mrf.mxu0
      %v788 = vadd.f32 %v700, %v787
      %v789 = vpop.f32.mrf.mxu0
      %790 = vmatprep.mubr.bf16.mxu0 0
      %791 = vmatmul.mubr.bf16.gmra.mxu0 %v672
      %v792 = vpop.f32.mrf.mxu0
      %v793 = vadd.f32 %v700, %v792
      %v794 = vpop.f32.mrf.mxu0
      %v795 = vpop.f32.mrf.mxu0
      %v796 = vadd.f32 %v700, %v795
      %v797 = vpop.f32.mrf.mxu0
      %798 = vmatprep.mubr.bf16.mxu0 0
      %799 = vmatmul.mubr.bf16.gmra.mxu0 %v673
      %v800 = vpop.f32.mrf.mxu0
      %v801 = vadd.f32 %v700, %v800
      %v802 = vpop.f32.mrf.mxu0
      %v803 = vpop.f32.mrf.mxu0
      %v804 = vadd.f32 %v700, %v803
      %v805 = vpop.f32.mrf.mxu0
      %806 = vmatprep.mubr.bf16.mxu0 0
      %807 = vmatmul.mubr.bf16.gmra.mxu0 %v674
      %v808 = vpop.f32.mrf.mxu0
      %v809 = vadd.f32 %v700, %v808
      %v810 = vpop.f32.mrf.mxu0
      %v811 = vpop.f32.mrf.mxu0
      %v812 = vadd.f32 %v700, %v811
      %v813 = vpop.f32.mrf.mxu0
      %814 = vmatprep.mubr.bf16.mxu0 0
      %815 = vmatmul.mubr.bf16.gmra.mxu0 %v675
      %v816 = vpop.f32.mrf.mxu0
      %v817 = vadd.f32 %v700, %v816
      %v818 = vpop.f32.mrf.mxu0
      %v819 = vpop.f32.mrf.mxu0
      %v820 = vadd.f32 %v700, %v819
      %v821 = vpop.f32.mrf.mxu0
      %822 = vmatprep.mubr.bf16.mxu0 0
      %823 = vmatmul.mubr.bf16.gmra.mxu0 %v676
      %v824 = vpop.f32.mrf.mxu0
      %v825 = vadd.f32 %v700, %v824
      %v826 = vpop.f32.mrf.mxu0
      %v827 = vpop.f32.mrf.mxu0
      %v828 = vadd.f32 %v700, %v827
      %v829 = vpop.f32.mrf.mxu0
      %830 = vmatprep.mubr.bf16.mxu0 0
      %831 = vmatmul.mubr.bf16.gmra.mxu0 %v677
      %v832 = vpop.f32.mrf.mxu0
      %v833 = vadd.f32 %v700, %v832
      %v834 = vpop.f32.mrf.mxu0
      %v835 = vpop.f32.mrf.mxu0
      %v836 = vadd.f32 %v700, %v835
      %v837 = vpop.f32.mrf.mxu0
      %838 = vmatprep.mubr.bf16.mxu0 0
      %839 = vmatmul.mubr.bf16.gmra.mxu0 %v678
      %v840 = vpop.f32.mrf.mxu0
      %v841 = vadd.f32 %v700, %v840
      %v842 = vpop.f32.mrf.mxu0
      %v843 = vpop.f32.mrf.mxu0
      %v844 = vadd.f32 %v700, %v843
      %v845 = vpop.f32.mrf.mxu0
      %846 = vdwg.mxu0
      %847 = vst [vmem:[#allocation13] sm:$0xff] %v785
      %848 = vst [vmem:[#allocation13 + $0x8] sm:$0xff] %v788
      %849 = vst [vmem:[#allocation13 + $0x10] sm:$0xff] %v793
      %850 = vst [vmem:[#allocation13 + $0x18] sm:$0xff] %v796
      %851 = vst [vmem:[#allocation13 + $0x20] sm:$0xff] %v801
      %852 = vst [vmem:[#allocation13 + $0x28] sm:$0xff] %v804
      %853 = vst [vmem:[#allocation13 + $0x30] sm:$0xff] %v809
      %854 = vst [vmem:[#allocation13 + $0x38] sm:$0xff] %v812
      %855 = vst [vmem:[#allocation13 + $0x40] sm:$0xff] %v817
      %856 = vst [vmem:[#allocation13 + $0x48] sm:$0xff] %v820
      %857 = vst [vmem:[#allocation13 + $0x50] sm:$0xff] %v825
      %858 = vst [vmem:[#allocation13 + $0x58] sm:$0xff] %v828
      %859 = vst [vmem:[#allocation13 + $0x60] sm:$0xff] %v833
      %860 = vst [vmem:[#allocation13 + $0x68] sm:$0xff] %v836
      %861 = vst [vmem:[#allocation13 + $0x70] sm:$0xff] %v841
      %862 = vst [vmem:[#allocation13 + $0x78] sm:$0xff] %v844
    $region61: #{tpu_custom_call.1} parent=1 // pred_fallthru
      _
    // Predicated region
    $region62: #{tpu_custom_call.1} parent=1 // pred_check
      _
    $region63: #{tpu_custom_call.1} parent=1 // pred_check_branch
      %864 = sbr.rel (0) target = $region65
    $region64: #{tpu_custom_call.1} parent=1 // pred_region
      %s866 = ssub.s32 2048, 2048
      %867 = vsyncadd [#allocation6], %s866
      %s868 = sshll.u32 [#allocation13], 4
      %s869 = int_to_ptr.vmem [resolvable:$true] %s868
      %874 = dma.vmem_to_hbm [thread:$0]  %s869, 2048, %s8, [#allocation6], 128, 128, 8
    $region65: #{tpu_custom_call.1} parent=1 // pred_fallthru
      _
    // Predicated region
    $region66: #{tpu_custom_call.1} parent=1 // pred_check
      _
    $region67: #{tpu_custom_call.1} parent=1 // pred_check_branch
      %876 = sbr.rel (0) target = $region69
    $region68: #{tpu_custom_call.1} parent=1 // pred_region
      %877 = dma.done [#allocation6], 2048
    $region69: #{tpu_custom_call.1} parent=1 // pred_fallthru
      _
    %878 = vsyncpa [#allocation5], 1
    %879 = vsyncpa [#allocation8], 1
    %880 = vsyncpa [#allocation11], 1
    %881 = vsyncpa [#allocation6], 1

</llo_original>
